<compile_context>
chip_gen: v6e
topology: v6e:2x2x1
jax: 0.10.0
libtpu: 0.0.40
codegen_flags: <defaults>
</compile_context>

<pallas_src>
import functools

import jax
import jax.numpy as jnp
from jax.experimental import pallas as pl
from jax.experimental.pallas import tpu as pltpu


def _round_up(x, m):
    return ((x + m - 1) // m) * m


# ----------------------------- Pallas kernel ------------------------------ #
def _mlp_kernel(*refs, num_layers: int):
    """refs = (x_ref, w0, b0, w1, b1, ..., w_last, b_last, o_ref).

    Hidden layers get tanh; the final (readout) layer is linear.  The
    intermediate activation never leaves VMEM/vregs.  Matmuls run with bf16
    operands on the MXU (f32 accumulation); the epilogue stays in f32.
    """
    x_ref = refs[0]
    o_ref = refs[-1]
    layer_refs = refs[1:-1]

    x = x_ref[...]                                   # f32 activation
    for li in range(num_layers):
        w = layer_refs[2 * li][...]                  # bf16 (in, out), pre-transposed
        b = layer_refs[2 * li + 1][...]              # f32  (1, out)
        y = jnp.dot(x.astype(jnp.bfloat16), w,
                    preferred_element_type=jnp.float32)   # MXU, bf16 in / f32 acc
        y = y + b                                          # VPU (f32)
        if li < num_layers - 1:
            y = jnp.tanh(y)                                # EUP (f32)
        x = y
    o_ref[...] = x.astype(o_ref.dtype)


def feedforward_pallas(params, x, output_size, *, batch_tile=256,
                       single_buffer_weights=True, vmem_limit_bytes=None):
    """Fused forward pass.

    params: list of (w_t, b); w_t is bf16 with shape (in, out), b is f32 with
            shape (1, out).  The last entry is the linear readout whose output
            dim has been zero-padded to a multiple of 128 (lane-dense stores).
    x:      (B, input_size) f32.
    """
    B, K = x.shape
    num_layers = len(params)
    n_pad = params[-1][0].shape[1]          # lane-padded readout width (mult of 128)

    # Largest batch tile (multiple of 8) up to batch_tile; one step when bt >= B.
    bt = min(_round_up(batch_tile, 8), _round_up(B, 8))
    B_pad = _round_up(B, bt)
    x_in = jnp.pad(x, ((0, B_pad - B), (0, 0))) if B_pad != B else x
    grid = (B_pad // bt,)

    # Weights/biases use a constant block index -> fetched once, VMEM-resident
    # across all batch tiles; request single buffering (nothing to pipeline).
    w_kwargs = {"pipeline_mode": pl.Buffered(1)} if single_buffer_weights else {}

    in_specs = [pl.BlockSpec((bt, K), lambda i: (i, 0))]
    flat_inputs = [x_in]
    for w_t, b in params:
        kin, kout = w_t.shape
        in_specs.append(pl.BlockSpec((kin, kout), lambda i: (0, 0), **w_kwargs))
        in_specs.append(pl.BlockSpec((1, kout), lambda i: (0, 0), **w_kwargs))
        flat_inputs.append(w_t)
        flat_inputs.append(b)

    cp = {"dimension_semantics": ("parallel",)}
    if vmem_limit_bytes is not None:
        cp["vmem_limit_bytes"] = vmem_limit_bytes

    out = pl.pallas_call(
        functools.partial(_mlp_kernel, num_layers=num_layers),
        out_shape=jax.ShapeDtypeStruct((B_pad, n_pad), x.dtype),
        grid=grid,
        in_specs=in_specs,
        out_specs=pl.BlockSpec((bt, n_pad), lambda i: (i, 0)),
        compiler_params=pltpu.CompilerParams(**cp),
    )(*flat_inputs)

    if B_pad != B:
        out = out[:B]
    if output_size != n_pad:
        out = out[:, :output_size]
    return out


# --------------------------- Parameter handling ---------------------------- #
def init_feedforward_params(key, input_size, hidden_sizes, output_size):
    """Mimics torch.nn.Linear default init: U(-1/sqrt(fan_in), 1/sqrt(fan_in)).

    Layout decisions made ONCE at init (zero layout ops per forward):
      * weights pre-transposed to (in, out) and stored bf16 (MXU operand dtype)
      * biases stored (1, out) in f32 (the epilogue stays f32)
      * the readout's output dim is zero-padded to a multiple of 128 so the
        kernel's output block is lane-dense; the padded columns compute exact
        zeros and are sliced off by the wrapper.
    """
    params = []
    layer_sizes = [input_size] + list(hidden_sizes) + [output_size]
    n_layers = len(layer_sizes) - 1
    for li, (fan_in, fan_out) in enumerate(zip(layer_sizes[:-1], layer_sizes[1:])):
        key, kw, kb = jax.random.split(key, 3)
        bound = float(1.0 / (fan_in ** 0.5))
        w_t = jax.random.uniform(kw, (fan_in, fan_out), jnp.float32, -bound, bound)
        b = jax.random.uniform(kb, (1, fan_out), jnp.float32, -bound, bound)
        if li == n_layers - 1:                      # lane-pad the readout layer
            fan_out_pad = _round_up(fan_out, 128)
            w_t = jnp.pad(w_t, ((0, 0), (0, fan_out_pad - fan_out)))
            b = jnp.pad(b, ((0, 0), (0, fan_out_pad - fan_out)))
        params.append((w_t.astype(jnp.bfloat16), b))
    return params


def feedforward_reference(params, x, output_size):
    """Pure-JAX reference (f32 math on the same bf16-stored weights)."""
    *hidden, readout = params
    h = x
    for w_t, b in hidden:
        h = jnp.tanh(h @ w_t.astype(jnp.float32) + b)
    w_t, b = readout
    y = h @ w_t.astype(jnp.float32) + b
    return y[:, :output_size]


# --------------------------------- Main ------------------------------------ #
if __name__ == "__main__":
    # Lane-friendly demo config: hidden widths 128, batch 64 -> a single
    # 64-row grid step (bt >= B), readout padded 8 -> 128 columns.
    input_size, hidden_sizes, output_size = 16, [128, 128], 8
    batch = 64

    key = jax.random.PRNGKey(0)
    key, kx = jax.random.split(key)
    params = init_feedforward_params(key, input_size, hidden_sizes, output_size)
    x = jax.random.normal(kx, (batch, input_size), jnp.float32)

    def run(single_buffer_weights):
        y = feedforward_pallas(params, x, output_size, batch_tile=128,
                               single_buffer_weights=single_buffer_weights)
        return jax.block_until_ready(y)

    try:
        out = run(True)
    except Exception:
        # pl.Buffered(1) (single-buffered resident weights) rejected by this
        # jax version; fall back to default pipelining (costs 2x weight VMEM).
        out = run(False)

    ref = feedforward_reference(params, x, output_size)
    assert out.shape == (batch, output_size)
    max_err = float(jnp.max(jnp.abs(out - ref)))
    assert jnp.allclose(out, ref, atol=3e-2, rtol=3e-2), (
        f"mismatch vs reference (max abs err {max_err})")

    print("KERNEL_OK")
</pallas_src>

<mosaic_0001>
module attributes {stable_mosaic.version = 11 : i64} {
  func.func @_mlp_kernel(%arg0: i32, %arg1: memref<64x16xf32, #tpu.memory_space<vmem>>, %arg2: memref<16x128xbf16, #tpu.memory_space<vmem>>, %arg3: memref<1x128xf32, #tpu.memory_space<vmem>>, %arg4: memref<128x128xbf16, #tpu.memory_space<vmem>>, %arg5: memref<1x128xf32, #tpu.memory_space<vmem>>, %arg6: memref<128x128xbf16, #tpu.memory_space<vmem>>, %arg7: memref<1x128xf32, #tpu.memory_space<vmem>>, %arg8: memref<64x128xf32, #tpu.memory_space<vmem>>) attributes {dimension_semantics = [#tpu.dimension_semantics<parallel>], iteration_bounds = array<i64: 1>, scalar_prefetch = 0 : i64, scratch_operands = 0 : i64, tpu.core_type = #tpu.core_type<tc>, window_params = [{transform_indices = @transform_0, window_bounds = array<i64: 64, 16>}, {pipeline_mode = #tpu.pipeline_mode<synchronous>, transform_indices = @transform_1, window_bounds = array<i64: 16, 128>}, {pipeline_mode = #tpu.pipeline_mode<synchronous>, transform_indices = @transform_2, window_bounds = array<i64: 1, 128>}, {pipeline_mode = #tpu.pipeline_mode<synchronous>, transform_indices = @transform_3, window_bounds = array<i64: 128, 128>}, {pipeline_mode = #tpu.pipeline_mode<synchronous>, transform_indices = @transform_4, window_bounds = array<i64: 1, 128>}, {pipeline_mode = #tpu.pipeline_mode<synchronous>, transform_indices = @transform_5, window_bounds = array<i64: 128, 128>}, {pipeline_mode = #tpu.pipeline_mode<synchronous>, transform_indices = @transform_6, window_bounds = array<i64: 1, 128>}, {transform_indices = @transform_7, window_bounds = array<i64: 64, 128>}]} {
    %c0 = arith.constant 0 : index
    %c0_0 = arith.constant 0 : index
    %0 = vector.load %arg1[%c0, %c0_0] : memref<64x16xf32, #tpu.memory_space<vmem>>, vector<64x16xf32>
    %c0_1 = arith.constant 0 : index
    %c0_2 = arith.constant 0 : index
    %1 = vector.load %arg2[%c0_1, %c0_2] : memref<16x128xbf16, #tpu.memory_space<vmem>>, vector<16x128xbf16>
    %c0_3 = arith.constant 0 : index
    %c0_4 = arith.constant 0 : index
    %2 = vector.load %arg3[%c0_3, %c0_4] : memref<1x128xf32, #tpu.memory_space<vmem>>, vector<1x128xf32>
    %3 = arith.truncf %0 : vector<64x16xf32> to vector<64x16xbf16>
    %cst = arith.constant dense<0.000000e+00> : vector<64x128xf32>
    %4 = tpu.matmul %3, %1, %cst {dimension_numbers = #tpu.dot_dimension_numbers<[1], [0], [0], [1], [0, 0, 1, 1], [], []>} : vector<64x16xbf16>, vector<16x128xbf16>, vector<64x128xf32> -> vector<64x128xf32>
    %5 = vector.broadcast %2 : vector<1x128xf32> to vector<64x128xf32>
    %6 = arith.addf %4, %5 : vector<64x128xf32>
    %7 = math.tanh %6 : vector<64x128xf32>
    %c0_5 = arith.constant 0 : index
    %c0_6 = arith.constant 0 : index
    %8 = vector.load %arg4[%c0_5, %c0_6] : memref<128x128xbf16, #tpu.memory_space<vmem>>, vector<128x128xbf16>
    %c0_7 = arith.constant 0 : index
    %c0_8 = arith.constant 0 : index
    %9 = vector.load %arg5[%c0_7, %c0_8] : memref<1x128xf32, #tpu.memory_space<vmem>>, vector<1x128xf32>
    %10 = arith.truncf %7 : vector<64x128xf32> to vector<64x128xbf16>
    %cst_9 = arith.constant dense<0.000000e+00> : vector<64x128xf32>
    %11 = tpu.matmul %10, %8, %cst_9 {dimension_numbers = #tpu.dot_dimension_numbers<[1], [0], [0], [1], [0, 0, 1, 1], [], []>} : vector<64x128xbf16>, vector<128x128xbf16>, vector<64x128xf32> -> vector<64x128xf32>
    %12 = vector.broadcast %9 : vector<1x128xf32> to vector<64x128xf32>
    %13 = arith.addf %11, %12 : vector<64x128xf32>
    %14 = math.tanh %13 : vector<64x128xf32>
    %c0_10 = arith.constant 0 : index
    %c0_11 = arith.constant 0 : index
    %15 = vector.load %arg6[%c0_10, %c0_11] : memref<128x128xbf16, #tpu.memory_space<vmem>>, vector<128x128xbf16>
    %c0_12 = arith.constant 0 : index
    %c0_13 = arith.constant 0 : index
    %16 = vector.load %arg7[%c0_12, %c0_13] : memref<1x128xf32, #tpu.memory_space<vmem>>, vector<1x128xf32>
    %17 = arith.truncf %14 : vector<64x128xf32> to vector<64x128xbf16>
    %cst_14 = arith.constant dense<0.000000e+00> : vector<64x128xf32>
    %18 = tpu.matmul %17, %15, %cst_14 {dimension_numbers = #tpu.dot_dimension_numbers<[1], [0], [0], [1], [0, 0, 1, 1], [], []>} : vector<64x128xbf16>, vector<128x128xbf16>, vector<64x128xf32> -> vector<64x128xf32>
    %19 = vector.broadcast %16 : vector<1x128xf32> to vector<64x128xf32>
    %20 = arith.addf %18, %19 : vector<64x128xf32>
    %c0_15 = arith.constant 0 : index
    %c0_16 = arith.constant 0 : index
    %21 = vector.load %arg8[%c0_15, %c0_16] : memref<64x128xf32, #tpu.memory_space<vmem>>, vector<64x128xf32>
    tpu.vector_store %arg8[%c0_15, %c0_16], %20 {strides = array<i32>} : memref<64x128xf32, #tpu.memory_space<vmem>>, vector<64x128xf32>,
    return
  }
  func.func @transform_0(%arg0: i32) -> (i32, i32) {
    %c0_i32 = arith.constant 0 : i32
    %c0_i32_0 = arith.constant 0 : i32
    return %arg0, %c0_i32 : i32, i32
  }
  func.func @transform_1(%arg0: i32) -> (i32, i32) {
    %c0_i32 = arith.constant 0 : i32
    %c0_i32_0 = arith.constant 0 : i32
    %c0_i32_1 = arith.constant 0 : i32
    return %c0_i32, %c0_i32_0 : i32, i32
  }
  func.func @transform_2(%arg0: i32) -> (i32, i32) {
    %c0_i32 = arith.constant 0 : i32
    %c0_i32_0 = arith.constant 0 : i32
    %c0_i32_1 = arith.constant 0 : i32
    return %c0_i32, %c0_i32_0 : i32, i32
  }
  func.func @transform_3(%arg0: i32) -> (i32, i32) {
    %c0_i32 = arith.constant 0 : i32
    %c0_i32_0 = arith.constant 0 : i32
    %c0_i32_1 = arith.constant 0 : i32
    return %c0_i32, %c0_i32_0 : i32, i32
  }
  func.func @transform_4(%arg0: i32) -> (i32, i32) {
    %c0_i32 = arith.constant 0 : i32
    %c0_i32_0 = arith.constant 0 : i32
    %c0_i32_1 = arith.constant 0 : i32
    return %c0_i32, %c0_i32_0 : i32, i32
  }
  func.func @transform_5(%arg0: i32) -> (i32, i32) {
    %c0_i32 = arith.constant 0 : i32
    %c0_i32_0 = arith.constant 0 : i32
    %c0_i32_1 = arith.constant 0 : i32
    return %c0_i32, %c0_i32_0 : i32, i32
  }
  func.func @transform_6(%arg0: i32) -> (i32, i32) {
    %c0_i32 = arith.constant 0 : i32
    %c0_i32_0 = arith.constant 0 : i32
    %c0_i32_1 = arith.constant 0 : i32
    return %c0_i32, %c0_i32_0 : i32, i32
  }
  func.func @transform_7(%arg0: i32) -> (i32, i32) {
    %c0_i32 = arith.constant 0 : i32
    %c0_i32_0 = arith.constant 0 : i32
    return %arg0, %c0_i32 : i32, i32
  }
}

module attributes {stable_mosaic.version = 11 : i64} {
  func.func @_mlp_kernel(%arg0: i32, %arg1: memref<64x16xf32, #tpu.memory_space<vmem>>, %arg2: memref<16x128xbf16, #tpu.memory_space<vmem>>, %arg3: memref<1x128xf32, #tpu.memory_space<vmem>>, %arg4: memref<128x128xbf16, #tpu.memory_space<vmem>>, %arg5: memref<1x128xf32, #tpu.memory_space<vmem>>, %arg6: memref<128x128xbf16, #tpu.memory_space<vmem>>, %arg7: memref<1x128xf32, #tpu.memory_space<vmem>>, %arg8: memref<64x128xf32, #tpu.memory_space<vmem>>) attributes {dimension_semantics = [#tpu.dimension_semantics<parallel>], iteration_bounds = array<i64: 1>, scalar_prefetch = 0 : i64, scratch_operands = 0 : i64, tpu.core_type = #tpu.core_type<tc>, window_params = [{transform_indices = @transform_0, window_bounds = array<i64: 64, 16>}, {pipeline_mode = #tpu.pipeline_mode<synchronous>, transform_indices = @transform_1, window_bounds = array<i64: 16, 128>}, {pipeline_mode = #tpu.pipeline_mode<synchronous>, transform_indices = @transform_2, window_bounds = array<i64: 1, 128>}, {pipeline_mode = #tpu.pipeline_mode<synchronous>, transform_indices = @transform_3, window_bounds = array<i64: 128, 128>}, {pipeline_mode = #tpu.pipeline_mode<synchronous>, transform_indices = @transform_4, window_bounds = array<i64: 1, 128>}, {pipeline_mode = #tpu.pipeline_mode<synchronous>, transform_indices = @transform_5, window_bounds = array<i64: 128, 128>}, {pipeline_mode = #tpu.pipeline_mode<synchronous>, transform_indices = @transform_6, window_bounds = array<i64: 1, 128>}, {transform_indices = @transform_7, window_bounds = array<i64: 64, 128>}]} {
    %c0 = arith.constant 0 : index
    %c0_0 = arith.constant 0 : index
    %0 = vector.load %arg1[%c0, %c0_0] : memref<64x16xf32, #tpu.memory_space<vmem>>, vector<64x16xf32>
    %c0_1 = arith.constant 0 : index
    %c0_2 = arith.constant 0 : index
    %1 = vector.load %arg2[%c0_1, %c0_2] : memref<16x128xbf16, #tpu.memory_space<vmem>>, vector<16x128xbf16>
    %c0_3 = arith.constant 0 : index
    %c0_4 = arith.constant 0 : index
    %2 = vector.load %arg3[%c0_3, %c0_4] : memref<1x128xf32, #tpu.memory_space<vmem>>, vector<1x128xf32>
    %3 = arith.truncf %0 : vector<64x16xf32> to vector<64x16xbf16>
    %cst = arith.constant dense<0.000000e+00> : vector<64x128xf32>
    %4 = tpu.matmul %3, %1, %cst {dimension_numbers = #tpu.dot_dimension_numbers<[1], [0], [0], [1], [0, 0, 1, 1], [], []>} : vector<64x16xbf16>, vector<16x128xbf16>, vector<64x128xf32> -> vector<64x128xf32>
    %5 = vector.broadcast %2 : vector<1x128xf32> to vector<64x128xf32>
    %6 = arith.addf %4, %5 : vector<64x128xf32>
    %7 = math.tanh %6 : vector<64x128xf32>
    %c0_5 = arith.constant 0 : index
    %c0_6 = arith.constant 0 : index
    %8 = vector.load %arg4[%c0_5, %c0_6] : memref<128x128xbf16, #tpu.memory_space<vmem>>, vector<128x128xbf16>
    %c0_7 = arith.constant 0 : index
    %c0_8 = arith.constant 0 : index
    %9 = vector.load %arg5[%c0_7, %c0_8] : memref<1x128xf32, #tpu.memory_space<vmem>>, vector<1x128xf32>
    %10 = arith.truncf %7 : vector<64x128xf32> to vector<64x128xbf16>
    %cst_9 = arith.constant dense<0.000000e+00> : vector<64x128xf32>
    %11 = tpu.matmul %10, %8, %cst_9 {dimension_numbers = #tpu.dot_dimension_numbers<[1], [0], [0], [1], [0, 0, 1, 1], [], []>} : vector<64x128xbf16>, vector<128x128xbf16>, vector<64x128xf32> -> vector<64x128xf32>
    %12 = vector.broadcast %9 : vector<1x128xf32> to vector<64x128xf32>
    %13 = arith.addf %11, %12 : vector<64x128xf32>
    %14 = math.tanh %13 : vector<64x128xf32>
    %c0_10 = arith.constant 0 : index
    %c0_11 = arith.constant 0 : index
    %15 = vector.load %arg6[%c0_10, %c0_11] : memref<128x128xbf16, #tpu.memory_space<vmem>>, vector<128x128xbf16>
    %c0_12 = arith.constant 0 : index
    %c0_13 = arith.constant 0 : index
    %16 = vector.load %arg7[%c0_12, %c0_13] : memref<1x128xf32, #tpu.memory_space<vmem>>, vector<1x128xf32>
    %17 = arith.truncf %14 : vector<64x128xf32> to vector<64x128xbf16>
    %cst_14 = arith.constant dense<0.000000e+00> : vector<64x128xf32>
    %18 = tpu.matmul %17, %15, %cst_14 {dimension_numbers = #tpu.dot_dimension_numbers<[1], [0], [0], [1], [0, 0, 1, 1], [], []>} : vector<64x128xbf16>, vector<128x128xbf16>, vector<64x128xf32> -> vector<64x128xf32>
    %19 = vector.broadcast %16 : vector<1x128xf32> to vector<64x128xf32>
    %20 = arith.addf %18, %19 : vector<64x128xf32>
    %c0_15 = arith.constant 0 : index
    %c0_16 = arith.constant 0 : index
    %21 = vector.load %arg8[%c0_15, %c0_16] : memref<64x128xf32, #tpu.memory_space<vmem>>, vector<64x128xf32>
    tpu.vector_store %arg8[%c0_15, %c0_16], %20 {strides = array<i32>} : memref<64x128xf32, #tpu.memory_space<vmem>>, vector<64x128xf32>,
    return
  }
  func.func @transform_0(%arg0: i32) -> (i32, i32) {
    %c0_i32 = arith.constant 0 : i32
    %c0_i32_0 = arith.constant 0 : i32
    return %arg0, %c0_i32 : i32, i32
  }
  func.func @transform_1(%arg0: i32) -> (i32, i32) {
    %c0_i32 = arith.constant 0 : i32
    %c0_i32_0 = arith.constant 0 : i32
    %c0_i32_1 = arith.constant 0 : i32
    return %c0_i32, %c0_i32_0 : i32, i32
  }
  func.func @transform_2(%arg0: i32) -> (i32, i32) {
    %c0_i32 = arith.constant 0 : i32
    %c0_i32_0 = arith.constant 0 : i32
    %c0_i32_1 = arith.constant 0 : i32
    return %c0_i32, %c0_i32_0 : i32, i32
  }
  func.func @transform_3(%arg0: i32) -> (i32, i32) {
    %c0_i32 = arith.constant 0 : i32
    %c0_i32_0 = arith.constant 0 : i32
    %c0_i32_1 = arith.constant 0 : i32
    return %c0_i32, %c0_i32_0 : i32, i32
  }
  func.func @transform_4(%arg0: i32) -> (i32, i32) {
    %c0_i32 = arith.constant 0 : i32
    %c0_i32_0 = arith.constant 0 : i32
    %c0_i32_1 = arith.constant 0 : i32
    return %c0_i32, %c0_i32_0 : i32, i32
  }
  func.func @transform_5(%arg0: i32) -> (i32, i32) {
    %c0_i32 = arith.constant 0 : i32
    %c0_i32_0 = arith.constant 0 : i32
    %c0_i32_1 = arith.constant 0 : i32
    return %c0_i32, %c0_i32_0 : i32, i32
  }
  func.func @transform_6(%arg0: i32) -> (i32, i32) {
    %c0_i32 = arith.constant 0 : i32
    %c0_i32_0 = arith.constant 0 : i32
    %c0_i32_1 = arith.constant 0 : i32
    return %c0_i32, %c0_i32_0 : i32, i32
  }
  func.func @transform_7(%arg0: i32) -> (i32, i32) {
    %c0_i32 = arith.constant 0 : i32
    %c0_i32_0 = arith.constant 0 : i32
    return %arg0, %c0_i32 : i32, i32
  }
}

</mosaic_0001>

<llo_original>
// kernel: tpu_custom_call.1
$region0: #{tpu_custom_call.1}
  #allocation0 [shape = 'u32[]', space=smem, size = 0x4, offset = 0x4, fixed_abs, tag = 'smem constant byte address 0x4 - core index']
  #allocation1 [shape = 'u32[144,128]{1,0:T(1,128)}', space=vmem, size = 0x12000, scoped, tag = 'internal scratch']
  %s0 = inlined_call_operand.vmem [shape: f32[64,16], index: 0, kind: input, shape index: {}]
  %s1 = inlined_call_operand.vmem [shape: bf16[16,128], index: 1, kind: input, shape index: {}]
  %s2 = inlined_call_operand.vmem [shape: f32[1,128], index: 2, kind: input, shape index: {}]
  %s3 = inlined_call_operand.vmem [shape: bf16[128,128], index: 3, kind: input, shape index: {}]
  %s4 = inlined_call_operand.vmem [shape: f32[1,128], index: 4, kind: input, shape index: {}]
  %s5 = inlined_call_operand.hbm [shape: bf16[128,128], index: 5, kind: input, shape index: {}]
  %s6 = inlined_call_operand.vmem [shape: f32[1,128], index: 6, kind: input, shape index: {}]
  %s7 = inlined_call_operand.hbm [shape: f32[64,128], index: 7, kind: output, shape index: {}]
  %s8 = sld [smem:[#allocation0]]
  $region42: #{tpu_custom_call.1} parent=0
    _
  %s10 = ssub.s32 1, %s8
  %s11 = scalar_select 0, %s10, %s8
  $region1: #{tpu_custom_call.1} parent=0
    #allocation2 [shape = 'u8[32768]{0}', space=vmem, size = 0x8000, scoped, tag = 'input window, operand 5, single buffered']
    #allocation3 [shape = 's32[1]{0}', space=sflag, size = 0x4, scoped, tag = 'scoped memory for tpu_custom_call.1']
    #allocation4 [shape = 's32[1]{0}', space=sflag, size = 0x4, scoped, tag = 'scoped memory for tpu_custom_call.1']
    #allocation5 [shape = 'u8[32768]{0}', space=vmem, size = 0x8000, scoped, tag = 'output window, operand 0, single buffered']
    %12 = vsyncpa [#allocation3], 0
    %13 = vsyncpa [#allocation4], 0
    // Predicated region
    $region2: #{tpu_custom_call.1} parent=1 // pred_check
      _
    $region3: #{tpu_custom_call.1} parent=1 // pred_check_branch
      %15 = sbr.rel (0) target = $region5
    $region4: #{tpu_custom_call.1} parent=1 // pred_region
      _
    $region5: #{tpu_custom_call.1} parent=1 // pred_fallthru
      _
    // Predicated region
    $region6: #{tpu_custom_call.1} parent=1 // pred_check
      _
    $region7: #{tpu_custom_call.1} parent=1 // pred_check_branch
      %17 = sbr.rel (0) target = $region9
    $region8: #{tpu_custom_call.1} parent=1 // pred_region
      _
    $region9: #{tpu_custom_call.1} parent=1 // pred_fallthru
      _
    // Predicated region
    $region10: #{tpu_custom_call.1} parent=1 // pred_check
      _
    $region11: #{tpu_custom_call.1} parent=1 // pred_check_branch
      %19 = sbr.rel (0) target = $region13
    $region12: #{tpu_custom_call.1} parent=1 // pred_region
      _
    $region13: #{tpu_custom_call.1} parent=1 // pred_fallthru
      _
    // Predicated region
    $region14: #{tpu_custom_call.1} parent=1 // pred_check
      _
    $region15: #{tpu_custom_call.1} parent=1 // pred_check_branch
      %21 = sbr.rel (0) target = $region17
    $region16: #{tpu_custom_call.1} parent=1 // pred_region
      _
    $region17: #{tpu_custom_call.1} parent=1 // pred_fallthru
      _
    // Predicated region
    $region18: #{tpu_custom_call.1} parent=1 // pred_check
      _
    $region19: #{tpu_custom_call.1} parent=1 // pred_check_branch
      %23 = sbr.rel (0) target = $region21
    $region20: #{tpu_custom_call.1} parent=1 // pred_region
      _
    $region21: #{tpu_custom_call.1} parent=1 // pred_fallthru
      _
    // Predicated region
    $region22: #{tpu_custom_call.1} parent=1 // pred_check
      _
    $region23: #{tpu_custom_call.1} parent=1 // pred_check_branch
      %25 = sbr.rel (0) target = $region25
    $region24: #{tpu_custom_call.1} parent=1 // pred_region
      %s27 = ssub.s32 1024, 1024
      %28 = vsyncadd [#allocation3], %s27
      %s29 = sshll.u32 [#allocation2], 4
      %s30 = int_to_ptr.vmem [resolvable:$true] %s29
      %35 = dma.hbm_to_vmem [thread:$0]  %s5, 1024, %s30, [#allocation3], 64, 64, 4
    $region25: #{tpu_custom_call.1} parent=1 // pred_fallthru
      _
    // Predicated region
    $region26: #{tpu_custom_call.1} parent=1 // pred_check
      _
    $region27: #{tpu_custom_call.1} parent=1 // pred_check_branch
      %37 = sbr.rel (0) target = $region29
    $region28: #{tpu_custom_call.1} parent=1 // pred_region
      _
    $region29: #{tpu_custom_call.1} parent=1 // pred_fallthru
      _
    // Predicated region
    $region30: #{tpu_custom_call.1} parent=1 // pred_check
      _
    $region31: #{tpu_custom_call.1} parent=1 // pred_check_branch
      %39 = sbr.rel (0) target = $region33
    $region32: #{tpu_custom_call.1} parent=1 // pred_region
      %40 = dma.done [#allocation3], 1024
    $region33: #{tpu_custom_call.1} parent=1 // pred_fallthru
      _
    %v42 = vld [vmem:[%s0] sm:$0xff]
    %v43 = vld [vmem:[%s0 + $0x8] sm:$0xff]
    %v44 = vld [vmem:[%s0 + $0x10] sm:$0xff]
    %v45 = vld [vmem:[%s0 + $0x18] sm:$0xff]
    %v46 = vld [vmem:[%s0 + $0x20] sm:$0xff]
    %v47 = vld [vmem:[%s0 + $0x28] sm:$0xff]
    %v48 = vld [vmem:[%s0 + $0x30] sm:$0xff]
    %v49 = vld [vmem:[%s0 + $0x38] sm:$0xff]
    %v50 = vld [vmem:[%s1] sm:$0xf]
    %v51 = vld [vmem:[%s1 + $0x4] sm:$0xf]
    %v52 = vld [vmem:[%s2] sm:$0x1]
    %v53 = vpack.c.bf16 %v43, %v42
    %v54 = vpack.c.bf16 %v45, %v44
    %v55 = vpack.c.bf16 %v47, %v46
    %v56 = vpack.c.bf16 %v49, %v48
    %v58 = vlaneseq
    %v59 = vshrl.u32 %v58, 7
    %v60 = vsub.s32 0, %v59
    %v61 = vrot.slane %v52, %v60
    %v65 = vunpack.c.l.b16 %v50
    %v66 = vunpack.c.l.b16 %v51
    %v67 = vpack.c.b16 %v66, %v65
    %vm69 = vcmask 130048
    %v71 = vsel %vm69, %v53, 0
    %v74 = vsel %vm69, %v54, 0
    %v77 = vsel %vm69, %v55, 0
    %v80 = vsel %vm69, %v56, 0
    %82 = vmatprep.subr.bf16.mxu0 0
    %83 = vmatpush1.bf16.msra.mxu0 0
    %84 = vmatprep.subr.bf16.mxu0 0
    %85 = vmatpush1.bf16.msra.mxu0 0
    %86 = vmatprep.subr.bf16.mxu0 0
    %87 = vmatpush1.bf16.msra.mxu0 0
    %88 = vmatprep.subr.bf16.mxu0 0
    %89 = vmatpush1.bf16.msra.mxu0 0
    %90 = vmatprep.subr.bf16.mxu0 0
    %91 = vmatpush1.bf16.msra.mxu0 0
    %92 = vmatprep.subr.bf16.mxu0 0
    %93 = vmatpush1.bf16.msra.mxu0 0
    %94 = vmatprep.subr.bf16.mxu0 0
    %95 = vmatpush1.bf16.msra.mxu0 0
    %96 = vmatprep.subr.bf16.mxu0 0
    %97 = vmatpush1.bf16.msra.mxu0 %v67
    %98 = vmatprep.subr.bf16.mxu0 0
    %99 = vmatpush2.bf16.msra.mxu0 0
    %100 = vmatprep.subr.bf16.mxu0 0
    %101 = vmatpush2.bf16.msra.mxu0 0
    %102 = vmatprep.subr.bf16.mxu0 0
    %103 = vmatpush2.bf16.msra.mxu0 0
    %104 = vmatprep.subr.bf16.mxu0 0
    %105 = vmatpush2.bf16.msra.mxu0 0
    %106 = vmatprep.subr.bf16.mxu0 0
    %107 = vmatpush2.bf16.msra.mxu0 0
    %108 = vmatprep.subr.bf16.mxu0 0
    %109 = vmatpush2.bf16.msra.mxu0 0
    %110 = vmatprep.subr.bf16.mxu0 0
    %111 = vmatpush2.bf16.msra.mxu0 0
    %112 = vmatprep.subr.bf16.mxu0 0
    %113 = vmatpush2.bf16.msra.mxu0 0
    %114 = vmatprep.mubr.bf16.mxu0 0
    %115 = vmatmul.mubr.bf16.gmra.mxu0 %v71
    %v116 = vpop.f32.mrf.mxu0
    %v117 = vadd.f32 %v61, %v116
    %v118 = vpop.f32.mrf.mxu0
    %v119 = vpop.f32.mrf.mxu0
    %v120 = vadd.f32 %v61, %v119
    %v121 = vpop.f32.mrf.mxu0
    %122 = vmatprep.mubr.bf16.mxu0 0
    %123 = vmatmul.mubr.bf16.gmra.mxu0 %v74
    %v124 = vpop.f32.mrf.mxu0
    %v125 = vadd.f32 %v61, %v124
    %v126 = vpop.f32.mrf.mxu0
    %v127 = vpop.f32.mrf.mxu0
    %v128 = vadd.f32 %v61, %v127
    %v129 = vpop.f32.mrf.mxu0
    %130 = vmatprep.mubr.bf16.mxu0 0
    %131 = vmatmul.mubr.bf16.gmra.mxu0 %v77
    %v132 = vpop.f32.mrf.mxu0
    %v133 = vadd.f32 %v61, %v132
    %v134 = vpop.f32.mrf.mxu0
    %v135 = vpop.f32.mrf.mxu0
    %v136 = vadd.f32 %v61, %v135
    %v137 = vpop.f32.mrf.mxu0
    %138 = vmatprep.mubr.bf16.mxu0 0
    %139 = vmatmul.mubr.bf16.gmra.mxu0 %v80
    %v140 = vpop.f32.mrf.mxu0
    %v141 = vadd.f32 %v61, %v140
    %v142 = vpop.f32.mrf.mxu0
    %v143 = vpop.f32.mrf.mxu0
    %v144 = vadd.f32 %v61, %v143
    %v145 = vpop.f32.mrf.mxu0
    %146 = vdwg.mxu0
    %v147 = vtanh.pop %v117
    %v148 = vtanh.pop %v120
    %v149 = vtanh.pop %v125
    %v150 = vtanh.pop %v128
    %v151 = vtanh.pop %v133
    %v152 = vtanh.pop %v136
    %v153 = vtanh.pop %v141
    %v154 = vtanh.pop %v144
    %v155 = vld [vmem:[%s3] sm:$0xf]
    %v156 = vld [vmem:[%s3 + $0x4] sm:$0xf]
    %v157 = vld [vmem:[%s3 + $0x8] sm:$0xf]
    %v158 = vld [vmem:[%s3 + $0xc] sm:$0xf]
    %v159 = vld [vmem:[%s3 + $0x10] sm:$0xf]
    %v160 = vld [vmem:[%s3 + $0x14] sm:$0xf]
    %v161 = vld [vmem:[%s3 + $0x18] sm:$0xf]
    %v162 = vld [vmem:[%s3 + $0x1c] sm:$0xf]
    %v163 = vld [vmem:[%s3 + $0x20] sm:$0xf]
    %v164 = vld [vmem:[%s3 + $0x24] sm:$0xf]
    %v165 = vld [vmem:[%s3 + $0x28] sm:$0xf]
    %v166 = vld [vmem:[%s3 + $0x2c] sm:$0xf]
    %v167 = vld [vmem:[%s3 + $0x30] sm:$0xf]
    %v168 = vld [vmem:[%s3 + $0x34] sm:$0xf]
    %v169 = vld [vmem:[%s3 + $0x38] sm:$0xf]
    %v170 = vld [vmem:[%s3 + $0x3c] sm:$0xf]
    %v171 = vld [vmem:[%s4] sm:$0x1]
    %v172 = vpack.c.bf16 %v148, %v147
    %v173 = vpack.c.bf16 %v150, %v149
    %v174 = vpack.c.bf16 %v152, %v151
    %v175 = vpack.c.bf16 %v154, %v153
    %v177 = vlaneseq
    %v178 = vshrl.u32 %v177, 7
    %v179 = vsub.s32 0, %v178
    %v180 = vrot.slane %v171, %v179
    %v198 = vunpack.c.l.b16 %v155
    %v199 = vunpack.c.l.b16 %v156
    %v200 = vunpack.c.l.b16 %v157
    %v201 = vunpack.c.l.b16 %v158
    %v202 = vunpack.c.l.b16 %v159
    %v203 = vunpack.c.l.b16 %v160
    %v204 = vunpack.c.l.b16 %v161
    %v205 = vunpack.c.l.b16 %v162
    %v206 = vunpack.c.l.b16 %v163
    %v207 = vunpack.c.l.b16 %v164
    %v208 = vunpack.c.l.b16 %v165
    %v209 = vunpack.c.l.b16 %v166
    %v210 = vunpack.c.l.b16 %v167
    %v211 = vunpack.c.l.b16 %v168
    %v212 = vunpack.c.l.b16 %v169
    %v213 = vunpack.c.l.b16 %v170
    %v214 = vpack.c.b16 %v199, %v198
    %v215 = vpack.c.b16 %v201, %v200
    %v216 = vpack.c.b16 %v203, %v202
    %v217 = vpack.c.b16 %v205, %v204
    %v218 = vpack.c.b16 %v207, %v206
    %v219 = vpack.c.b16 %v209, %v208
    %v220 = vpack.c.b16 %v211, %v210
    %v221 = vpack.c.b16 %v213, %v212
    %230 = vmatprep.subr.bf16.mxu0 0
    %231 = vmatpush1.bf16.msra.mxu0 %v221
    %232 = vmatprep.subr.bf16.mxu0 0
    %233 = vmatpush1.bf16.msra.mxu0 %v220
    %234 = vmatprep.subr.bf16.mxu0 0
    %235 = vmatpush1.bf16.msra.mxu0 %v219
    %236 = vmatprep.subr.bf16.mxu0 0
    %237 = vmatpush1.bf16.msra.mxu0 %v218
    %238 = vmatprep.subr.bf16.mxu0 0
    %239 = vmatpush1.bf16.msra.mxu0 %v217
    %240 = vmatprep.subr.bf16.mxu0 0
    %241 = vmatpush1.bf16.msra.mxu0 %v216
    %242 = vmatprep.subr.bf16.mxu0 0
    %243 = vmatpush1.bf16.msra.mxu0 %v215
    %244 = vmatprep.subr.bf16.mxu0 0
    %245 = vmatpush1.bf16.msra.mxu0 %v214
    %246 = vmatprep.subr.bf16.mxu0 0
    %247 = vmatpush2.bf16.msra.mxu0 0
    %248 = vmatprep.subr.bf16.mxu0 0
    %249 = vmatpush2.bf16.msra.mxu0 0
    %250 = vmatprep.subr.bf16.mxu0 0
    %251 = vmatpush2.bf16.msra.mxu0 0
    %252 = vmatprep.subr.bf16.mxu0 0
    %253 = vmatpush2.bf16.msra.mxu0 0
    %254 = vmatprep.subr.bf16.mxu0 0
    %255 = vmatpush2.bf16.msra.mxu0 0
    %256 = vmatprep.subr.bf16.mxu0 0
    %257 = vmatpush2.bf16.msra.mxu0 0
    %258 = vmatprep.subr.bf16.mxu0 0
    %259 = vmatpush2.bf16.msra.mxu0 0
    %260 = vmatprep.subr.bf16.mxu0 0
    %261 = vmatpush2.bf16.msra.mxu0 0
    %262 = vmatprep.mubr.bf16.mxu0 0
    %263 = vmatmul.mubr.bf16.gmra.mxu0 %v172
    %v264 = vpop.f32.mrf.mxu0
    %v265 = vadd.f32 %v180, %v264
    %v266 = vpop.f32.mrf.mxu0
    %v267 = vpop.f32.mrf.mxu0
    %v268 = vadd.f32 %v180, %v267
    %v269 = vpop.f32.mrf.mxu0
    %270 = vmatprep.mubr.bf16.mxu0 0
    %271 = vmatmul.mubr.bf16.gmra.mxu0 %v173
    %v272 = vpop.f32.mrf.mxu0
    %v273 = vadd.f32 %v180, %v272
    %v274 = vpop.f32.mrf.mxu0
    %v275 = vpop.f32.mrf.mxu0
    %v276 = vadd.f32 %v180, %v275
    %v277 = vpop.f32.mrf.mxu0
    %278 = vmatprep.mubr.bf16.mxu0 0
    %279 = vmatmul.mubr.bf16.gmra.mxu0 %v174
    %v280 = vpop.f32.mrf.mxu0
    %v281 = vadd.f32 %v180, %v280
    %v282 = vpop.f32.mrf.mxu0
    %v283 = vpop.f32.mrf.mxu0
    %v284 = vadd.f32 %v180, %v283
    %v285 = vpop.f32.mrf.mxu0
    %286 = vmatprep.mubr.bf16.mxu0 0
    %287 = vmatmul.mubr.bf16.gmra.mxu0 %v175
    %v288 = vpop.f32.mrf.mxu0
    %v289 = vadd.f32 %v180, %v288
    %v290 = vpop.f32.mrf.mxu0
    %v291 = vpop.f32.mrf.mxu0
    %v292 = vadd.f32 %v180, %v291
    %v293 = vpop.f32.mrf.mxu0
    %294 = vdwg.mxu0
    %v295 = vtanh.pop %v265
    %v296 = vtanh.pop %v268
    %v297 = vtanh.pop %v273
    %v298 = vtanh.pop %v276
    %v299 = vtanh.pop %v281
    %v300 = vtanh.pop %v284
    %v301 = vtanh.pop %v289
    %v302 = vtanh.pop %v292
    %v303 = vld [vmem:[#allocation2] sm:$0xf]
    %v304 = vld [vmem:[#allocation2 + $0x4] sm:$0xf]
    %v305 = vld [vmem:[#allocation2 + $0x8] sm:$0xf]
    %v306 = vld [vmem:[#allocation2 + $0xc] sm:$0xf]
    %v307 = vld [vmem:[#allocation2 + $0x10] sm:$0xf]
    %v308 = vld [vmem:[#allocation2 + $0x14] sm:$0xf]
    %v309 = vld [vmem:[#allocation2 + $0x18] sm:$0xf]
    %v310 = vld [vmem:[#allocation2 + $0x1c] sm:$0xf]
    %v311 = vld [vmem:[#allocation2 + $0x20] sm:$0xf]
    %v312 = vld [vmem:[#allocation2 + $0x24] sm:$0xf]
    %v313 = vld [vmem:[#allocation2 + $0x28] sm:$0xf]
    %v314 = vld [vmem:[#allocation2 + $0x2c] sm:$0xf]
    %v315 = vld [vmem:[#allocation2 + $0x30] sm:$0xf]
    %v316 = vld [vmem:[#allocation2 + $0x34] sm:$0xf]
    %v317 = vld [vmem:[#allocation2 + $0x38] sm:$0xf]
    %v318 = vld [vmem:[#allocation2 + $0x3c] sm:$0xf]
    %v319 = vld [vmem:[%s6] sm:$0x1]
    %v320 = vpack.c.bf16 %v296, %v295
    %v321 = vpack.c.bf16 %v298, %v297
    %v322 = vpack.c.bf16 %v300, %v299
    %v323 = vpack.c.bf16 %v302, %v301
    %v325 = vlaneseq
    %v326 = vshrl.u32 %v325, 7
    %v327 = vsub.s32 0, %v326
    %v328 = vrot.slane %v319, %v327
    %v346 = vunpack.c.l.b16 %v303
    %v347 = vunpack.c.l.b16 %v304
    %v348 = vunpack.c.l.b16 %v305
    %v349 = vunpack.c.l.b16 %v306
    %v350 = vunpack.c.l.b16 %v307
    %v351 = vunpack.c.l.b16 %v308
    %v352 = vunpack.c.l.b16 %v309
    %v353 = vunpack.c.l.b16 %v310
    %v354 = vunpack.c.l.b16 %v311
    %v355 = vunpack.c.l.b16 %v312
    %v356 = vunpack.c.l.b16 %v313
    %v357 = vunpack.c.l.b16 %v314
    %v358 = vunpack.c.l.b16 %v315
    %v359 = vunpack.c.l.b16 %v316
    %v360 = vunpack.c.l.b16 %v317
    %v361 = vunpack.c.l.b16 %v318
    %v362 = vpack.c.b16 %v347, %v346
    %v363 = vpack.c.b16 %v349, %v348
    %v364 = vpack.c.b16 %v351, %v350
    %v365 = vpack.c.b16 %v353, %v352
    %v366 = vpack.c.b16 %v355, %v354
    %v367 = vpack.c.b16 %v357, %v356
    %v368 = vpack.c.b16 %v359, %v358
    %v369 = vpack.c.b16 %v361, %v360
    %378 = vmatprep.subr.bf16.mxu0 0
    %379 = vmatpush1.bf16.msra.mxu0 %v369
    %380 = vmatprep.subr.bf16.mxu0 0
    %381 = vmatpush1.bf16.msra.mxu0 %v368
    %382 = vmatprep.subr.bf16.mxu0 0
    %383 = vmatpush1.bf16.msra.mxu0 %v367
    %384 = vmatprep.subr.bf16.mxu0 0
    %385 = vmatpush1.bf16.msra.mxu0 %v366
    %386 = vmatprep.subr.bf16.mxu0 0
    %387 = vmatpush1.bf16.msra.mxu0 %v365
    %388 = vmatprep.subr.bf16.mxu0 0
    %389 = vmatpush1.bf16.msra.mxu0 %v364
    %390 = vmatprep.subr.bf16.mxu0 0
    %391 = vmatpush1.bf16.msra.mxu0 %v363
    %392 = vmatprep.subr.bf16.mxu0 0
    %393 = vmatpush1.bf16.msra.mxu0 %v362
    %394 = vmatprep.subr.bf16.mxu0 0
    %395 = vmatpush2.bf16.msra.mxu0 0
    %396 = vmatprep.subr.bf16.mxu0 0
    %397 = vmatpush2.bf16.msra.mxu0 0
    %398 = vmatprep.subr.bf16.mxu0 0
    %399 = vmatpush2.bf16.msra.mxu0 0
    %400 = vmatprep.subr.bf16.mxu0 0
    %401 = vmatpush2.bf16.msra.mxu0 0
    %402 = vmatprep.subr.bf16.mxu0 0
    %403 = vmatpush2.bf16.msra.mxu0 0
    %404 = vmatprep.subr.bf16.mxu0 0
    %405 = vmatpush2.bf16.msra.mxu0 0
    %406 = vmatprep.subr.bf16.mxu0 0
    %407 = vmatpush2.bf16.msra.mxu0 0
    %408 = vmatprep.subr.bf16.mxu0 0
    %409 = vmatpush2.bf16.msra.mxu0 0
    %410 = vmatprep.mubr.bf16.mxu0 0
    %411 = vmatmul.mubr.bf16.gmra.mxu0 %v320
    %v412 = vpop.f32.mrf.mxu0
    %v413 = vadd.f32 %v328, %v412
    %v414 = vpop.f32.mrf.mxu0
    %v415 = vpop.f32.mrf.mxu0
    %v416 = vadd.f32 %v328, %v415
    %v417 = vpop.f32.mrf.mxu0
    %418 = vmatprep.mubr.bf16.mxu0 0
    %419 = vmatmul.mubr.bf16.gmra.mxu0 %v321
    %v420 = vpop.f32.mrf.mxu0
    %v421 = vadd.f32 %v328, %v420
    %v422 = vpop.f32.mrf.mxu0
    %v423 = vpop.f32.mrf.mxu0
    %v424 = vadd.f32 %v328, %v423
    %v425 = vpop.f32.mrf.mxu0
    %426 = vmatprep.mubr.bf16.mxu0 0
    %427 = vmatmul.mubr.bf16.gmra.mxu0 %v322
    %v428 = vpop.f32.mrf.mxu0
    %v429 = vadd.f32 %v328, %v428
    %v430 = vpop.f32.mrf.mxu0
    %v431 = vpop.f32.mrf.mxu0
    %v432 = vadd.f32 %v328, %v431
    %v433 = vpop.f32.mrf.mxu0
    %434 = vmatprep.mubr.bf16.mxu0 0
    %435 = vmatmul.mubr.bf16.gmra.mxu0 %v323
    %v436 = vpop.f32.mrf.mxu0
    %v437 = vadd.f32 %v328, %v436
    %v438 = vpop.f32.mrf.mxu0
    %v439 = vpop.f32.mrf.mxu0
    %v440 = vadd.f32 %v328, %v439
    %v441 = vpop.f32.mrf.mxu0
    %442 = vdwg.mxu0
    %443 = vst [vmem:[#allocation5] sm:$0xff] %v413
    %444 = vst [vmem:[#allocation5 + $0x8] sm:$0xff] %v416
    %445 = vst [vmem:[#allocation5 + $0x10] sm:$0xff] %v421
    %446 = vst [vmem:[#allocation5 + $0x18] sm:$0xff] %v424
    %447 = vst [vmem:[#allocation5 + $0x20] sm:$0xff] %v429
    %448 = vst [vmem:[#allocation5 + $0x28] sm:$0xff] %v432
    %449 = vst [vmem:[#allocation5 + $0x30] sm:$0xff] %v437
    %450 = vst [vmem:[#allocation5 + $0x38] sm:$0xff] %v440
    // Predicated region
    $region34: #{tpu_custom_call.1} parent=1 // pred_check
      _
    $region35: #{tpu_custom_call.1} parent=1 // pred_check_branch
      %452 = sbr.rel (0) target = $region37
    $region36: #{tpu_custom_call.1} parent=1 // pred_region
      %s454 = ssub.s32 1024, 1024
      %455 = vsyncadd [#allocation4], %s454
      %s456 = sshll.u32 [#allocation5], 4
      %s457 = int_to_ptr.vmem [resolvable:$true] %s456
      %462 = dma.vmem_to_hbm [thread:$0]  %s457, 1024, %s7, [#allocation4], 128, 128, 8
    $region37: #{tpu_custom_call.1} parent=1 // pred_fallthru
      _
    // Predicated region
    $region38: #{tpu_custom_call.1} parent=1 // pred_check
      _
    $region39: #{tpu_custom_call.1} parent=1 // pred_check_branch
      %464 = sbr.rel (0) target = $region41
    $region40: #{tpu_custom_call.1} parent=1 // pred_region
      %465 = dma.done [#allocation4], 1024
    $region41: #{tpu_custom_call.1} parent=1 // pred_fallthru
      _
    %466 = vsyncpa [#allocation3], 1
    %467 = vsyncpa [#allocation4], 1

// kernel: tpu_custom_call.1
$region0: #{tpu_custom_call.1}
  #allocation0 [shape = 'u32[]', space=smem, size = 0x4, offset = 0x4, fixed_abs, tag = 'smem constant byte address 0x4 - core index']
  #allocation1 [shape = 'u32[144,128]{1,0:T(1,128)}', space=vmem, size = 0x12000, scoped, tag = 'internal scratch']
  %s0 = inlined_call_operand.vmem [shape: f32[64,16], index: 0, kind: input, shape index: {}]
  %s1 = inlined_call_operand.vmem [shape: bf16[16,128], index: 1, kind: input, shape index: {}]
  %s2 = inlined_call_operand.vmem [shape: f32[1,128], index: 2, kind: input, shape index: {}]
  %s3 = inlined_call_operand.vmem [shape: bf16[128,128], index: 3, kind: input, shape index: {}]
  %s4 = inlined_call_operand.vmem [shape: f32[1,128], index: 4, kind: input, shape index: {}]
  %s5 = inlined_call_operand.hbm [shape: bf16[128,128], index: 5, kind: input, shape index: {}]
  %s6 = inlined_call_operand.vmem [shape: f32[1,128], index: 6, kind: input, shape index: {}]
  %s7 = inlined_call_operand.hbm [shape: f32[64,128], index: 7, kind: output, shape index: {}]
  %s8 = sld [smem:[#allocation0]]
  $region42: #{tpu_custom_call.1} parent=0
    _
  %s10 = ssub.s32 1, %s8
  %s11 = scalar_select 0, %s10, %s8
  $region1: #{tpu_custom_call.1} parent=0
    #allocation2 [shape = 'u8[32768]{0}', space=vmem, size = 0x8000, scoped, tag = 'input window, operand 5, single buffered']
    #allocation3 [shape = 's32[1]{0}', space=sflag, size = 0x4, scoped, tag = 'scoped memory for tpu_custom_call.1']
    #allocation4 [shape = 's32[1]{0}', space=sflag, size = 0x4, scoped, tag = 'scoped memory for tpu_custom_call.1']
    #allocation5 [shape = 'u8[32768]{0}', space=vmem, size = 0x8000, scoped, tag = 'output window, operand 0, single buffered']
    %12 = vsyncpa [#allocation3], 0
    %13 = vsyncpa [#allocation4], 0
    // Predicated region
    $region2: #{tpu_custom_call.1} parent=1 // pred_check
      _
    $region3: #{tpu_custom_call.1} parent=1 // pred_check_branch
      %15 = sbr.rel (0) target = $region5
    $region4: #{tpu_custom_call.1} parent=1 // pred_region
      _
    $region5: #{tpu_custom_call.1} parent=1 // pred_fallthru
      _
    // Predicated region
    $region6: #{tpu_custom_call.1} parent=1 // pred_check
      _
    $region7: #{tpu_custom_call.1} parent=1 // pred_check_branch
      %17 = sbr.rel (0) target = $region9
    $region8: #{tpu_custom_call.1} parent=1 // pred_region
      _
    $region9: #{tpu_custom_call.1} parent=1 // pred_fallthru
      _
    // Predicated region
    $region10: #{tpu_custom_call.1} parent=1 // pred_check
      _
    $region11: #{tpu_custom_call.1} parent=1 // pred_check_branch
      %19 = sbr.rel (0) target = $region13
    $region12: #{tpu_custom_call.1} parent=1 // pred_region
      _
    $region13: #{tpu_custom_call.1} parent=1 // pred_fallthru
      _
    // Predicated region
    $region14: #{tpu_custom_call.1} parent=1 // pred_check
      _
    $region15: #{tpu_custom_call.1} parent=1 // pred_check_branch
      %21 = sbr.rel (0) target = $region17
    $region16: #{tpu_custom_call.1} parent=1 // pred_region
      _
    $region17: #{tpu_custom_call.1} parent=1 // pred_fallthru
      _
    // Predicated region
    $region18: #{tpu_custom_call.1} parent=1 // pred_check
      _
    $region19: #{tpu_custom_call.1} parent=1 // pred_check_branch
      %23 = sbr.rel (0) target = $region21
    $region20: #{tpu_custom_call.1} parent=1 // pred_region
      _
    $region21: #{tpu_custom_call.1} parent=1 // pred_fallthru
      _
    // Predicated region
    $region22: #{tpu_custom_call.1} parent=1 // pred_check
      _
    $region23: #{tpu_custom_call.1} parent=1 // pred_check_branch
      %25 = sbr.rel (0) target = $region25
    $region24: #{tpu_custom_call.1} parent=1 // pred_region
      %s27 = ssub.s32 1024, 1024
      %28 = vsyncadd [#allocation3], %s27
      %s29 = sshll.u32 [#allocation2], 4
      %s30 = int_to_ptr.vmem [resolvable:$true] %s29
      %35 = dma.hbm_to_vmem [thread:$0]  %s5, 1024, %s30, [#allocation3], 64, 64, 4
    $region25: #{tpu_custom_call.1} parent=1 // pred_fallthru
      _
    // Predicated region
    $region26: #{tpu_custom_call.1} parent=1 // pred_check
      _
    $region27: #{tpu_custom_call.1} parent=1 // pred_check_branch
      %37 = sbr.rel (0) target = $region29
    $region28: #{tpu_custom_call.1} parent=1 // pred_region
      _
    $region29: #{tpu_custom_call.1} parent=1 // pred_fallthru
      _
    // Predicated region
    $region30: #{tpu_custom_call.1} parent=1 // pred_check
      _
    $region31: #{tpu_custom_call.1} parent=1 // pred_check_branch
      %39 = sbr.rel (0) target = $region33
    $region32: #{tpu_custom_call.1} parent=1 // pred_region
      %40 = dma.done [#allocation3], 1024
    $region33: #{tpu_custom_call.1} parent=1 // pred_fallthru
      _
    %v42 = vld [vmem:[%s0] sm:$0xff]
    %v43 = vld [vmem:[%s0 + $0x8] sm:$0xff]
    %v44 = vld [vmem:[%s0 + $0x10] sm:$0xff]
    %v45 = vld [vmem:[%s0 + $0x18] sm:$0xff]
    %v46 = vld [vmem:[%s0 + $0x20] sm:$0xff]
    %v47 = vld [vmem:[%s0 + $0x28] sm:$0xff]
    %v48 = vld [vmem:[%s0 + $0x30] sm:$0xff]
    %v49 = vld [vmem:[%s0 + $0x38] sm:$0xff]
    %v50 = vld [vmem:[%s1] sm:$0xf]
    %v51 = vld [vmem:[%s1 + $0x4] sm:$0xf]
    %v52 = vld [vmem:[%s2] sm:$0x1]
    %v53 = vpack.c.bf16 %v43, %v42
    %v54 = vpack.c.bf16 %v45, %v44
    %v55 = vpack.c.bf16 %v47, %v46
    %v56 = vpack.c.bf16 %v49, %v48
    %v58 = vlaneseq
    %v59 = vshrl.u32 %v58, 7
    %v60 = vsub.s32 0, %v59
    %v61 = vrot.slane %v52, %v60
    %v65 = vunpack.c.l.b16 %v50
    %v66 = vunpack.c.l.b16 %v51
    %v67 = vpack.c.b16 %v66, %v65
    %vm69 = vcmask 130048
    %v71 = vsel %vm69, %v53, 0
    %v74 = vsel %vm69, %v54, 0
    %v77 = vsel %vm69, %v55, 0
    %v80 = vsel %vm69, %v56, 0
    %82 = vmatprep.subr.bf16.mxu0 0
    %83 = vmatpush1.bf16.msra.mxu0 0
    %84 = vmatprep.subr.bf16.mxu0 0
    %85 = vmatpush1.bf16.msra.mxu0 0
    %86 = vmatprep.subr.bf16.mxu0 0
    %87 = vmatpush1.bf16.msra.mxu0 0
    %88 = vmatprep.subr.bf16.mxu0 0
    %89 = vmatpush1.bf16.msra.mxu0 0
    %90 = vmatprep.subr.bf16.mxu0 0
    %91 = vmatpush1.bf16.msra.mxu0 0
    %92 = vmatprep.subr.bf16.mxu0 0
    %93 = vmatpush1.bf16.msra.mxu0 0
    %94 = vmatprep.subr.bf16.mxu0 0
    %95 = vmatpush1.bf16.msra.mxu0 0
    %96 = vmatprep.subr.bf16.mxu0 0
    %97 = vmatpush1.bf16.msra.mxu0 %v67
    %98 = vmatprep.subr.bf16.mxu0 0
    %99 = vmatpush2.bf16.msra.mxu0 0
    %100 = vmatprep.subr.bf16.mxu0 0
    %101 = vmatpush2.bf16.msra.mxu0 0
    %102 = vmatprep.subr.bf16.mxu0 0
    %103 = vmatpush2.bf16.msra.mxu0 0
    %104 = vmatprep.subr.bf16.mxu0 0
    %105 = vmatpush2.bf16.msra.mxu0 0
    %106 = vmatprep.subr.bf16.mxu0 0
    %107 = vmatpush2.bf16.msra.mxu0 0
    %108 = vmatprep.subr.bf16.mxu0 0
    %109 = vmatpush2.bf16.msra.mxu0 0
    %110 = vmatprep.subr.bf16.mxu0 0
    %111 = vmatpush2.bf16.msra.mxu0 0
    %112 = vmatprep.subr.bf16.mxu0 0
    %113 = vmatpush2.bf16.msra.mxu0 0
    %114 = vmatprep.mubr.bf16.mxu0 0
    %115 = vmatmul.mubr.bf16.gmra.mxu0 %v71
    %v116 = vpop.f32.mrf.mxu0
    %v117 = vadd.f32 %v61, %v116
    %v118 = vpop.f32.mrf.mxu0
    %v119 = vpop.f32.mrf.mxu0
    %v120 = vadd.f32 %v61, %v119
    %v121 = vpop.f32.mrf.mxu0
    %122 = vmatprep.mubr.bf16.mxu0 0
    %123 = vmatmul.mubr.bf16.gmra.mxu0 %v74
    %v124 = vpop.f32.mrf.mxu0
    %v125 = vadd.f32 %v61, %v124
    %v126 = vpop.f32.mrf.mxu0
    %v127 = vpop.f32.mrf.mxu0
    %v128 = vadd.f32 %v61, %v127
    %v129 = vpop.f32.mrf.mxu0
    %130 = vmatprep.mubr.bf16.mxu0 0
    %131 = vmatmul.mubr.bf16.gmra.mxu0 %v77
    %v132 = vpop.f32.mrf.mxu0
    %v133 = vadd.f32 %v61, %v132
    %v134 = vpop.f32.mrf.mxu0
    %v135 = vpop.f32.mrf.mxu0
    %v136 = vadd.f32 %v61, %v135
    %v137 = vpop.f32.mrf.mxu0
    %138 = vmatprep.mubr.bf16.mxu0 0
    %139 = vmatmul.mubr.bf16.gmra.mxu0 %v80
    %v140 = vpop.f32.mrf.mxu0
    %v141 = vadd.f32 %v61, %v140
    %v142 = vpop.f32.mrf.mxu0
    %v143 = vpop.f32.mrf.mxu0
    %v144 = vadd.f32 %v61, %v143
    %v145 = vpop.f32.mrf.mxu0
    %146 = vdwg.mxu0
    %v147 = vtanh.pop %v117
    %v148 = vtanh.pop %v120
    %v149 = vtanh.pop %v125
    %v150 = vtanh.pop %v128
    %v151 = vtanh.pop %v133
    %v152 = vtanh.pop %v136
    %v153 = vtanh.pop %v141
    %v154 = vtanh.pop %v144
    %v155 = vld [vmem:[%s3] sm:$0xf]
    %v156 = vld [vmem:[%s3 + $0x4] sm:$0xf]
    %v157 = vld [vmem:[%s3 + $0x8] sm:$0xf]
    %v158 = vld [vmem:[%s3 + $0xc] sm:$0xf]
    %v159 = vld [vmem:[%s3 + $0x10] sm:$0xf]
    %v160 = vld [vmem:[%s3 + $0x14] sm:$0xf]
    %v161 = vld [vmem:[%s3 + $0x18] sm:$0xf]
    %v162 = vld [vmem:[%s3 + $0x1c] sm:$0xf]
    %v163 = vld [vmem:[%s3 + $0x20] sm:$0xf]
    %v164 = vld [vmem:[%s3 + $0x24] sm:$0xf]
    %v165 = vld [vmem:[%s3 + $0x28] sm:$0xf]
    %v166 = vld [vmem:[%s3 + $0x2c] sm:$0xf]
    %v167 = vld [vmem:[%s3 + $0x30] sm:$0xf]
    %v168 = vld [vmem:[%s3 + $0x34] sm:$0xf]
    %v169 = vld [vmem:[%s3 + $0x38] sm:$0xf]
    %v170 = vld [vmem:[%s3 + $0x3c] sm:$0xf]
    %v171 = vld [vmem:[%s4] sm:$0x1]
    %v172 = vpack.c.bf16 %v148, %v147
    %v173 = vpack.c.bf16 %v150, %v149
    %v174 = vpack.c.bf16 %v152, %v151
    %v175 = vpack.c.bf16 %v154, %v153
    %v177 = vlaneseq
    %v178 = vshrl.u32 %v177, 7
    %v179 = vsub.s32 0, %v178
    %v180 = vrot.slane %v171, %v179
    %v198 = vunpack.c.l.b16 %v155
    %v199 = vunpack.c.l.b16 %v156
    %v200 = vunpack.c.l.b16 %v157
    %v201 = vunpack.c.l.b16 %v158
    %v202 = vunpack.c.l.b16 %v159
    %v203 = vunpack.c.l.b16 %v160
    %v204 = vunpack.c.l.b16 %v161
    %v205 = vunpack.c.l.b16 %v162
    %v206 = vunpack.c.l.b16 %v163
    %v207 = vunpack.c.l.b16 %v164
    %v208 = vunpack.c.l.b16 %v165
    %v209 = vunpack.c.l.b16 %v166
    %v210 = vunpack.c.l.b16 %v167
    %v211 = vunpack.c.l.b16 %v168
    %v212 = vunpack.c.l.b16 %v169
    %v213 = vunpack.c.l.b16 %v170
    %v214 = vpack.c.b16 %v199, %v198
    %v215 = vpack.c.b16 %v201, %v200
    %v216 = vpack.c.b16 %v203, %v202
    %v217 = vpack.c.b16 %v205, %v204
    %v218 = vpack.c.b16 %v207, %v206
    %v219 = vpack.c.b16 %v209, %v208
    %v220 = vpack.c.b16 %v211, %v210
    %v221 = vpack.c.b16 %v213, %v212
    %230 = vmatprep.subr.bf16.mxu0 0
    %231 = vmatpush1.bf16.msra.mxu0 %v221
    %232 = vmatprep.subr.bf16.mxu0 0
    %233 = vmatpush1.bf16.msra.mxu0 %v220
    %234 = vmatprep.subr.bf16.mxu0 0
    %235 = vmatpush1.bf16.msra.mxu0 %v219
    %236 = vmatprep.subr.bf16.mxu0 0
    %237 = vmatpush1.bf16.msra.mxu0 %v218
    %238 = vmatprep.subr.bf16.mxu0 0
    %239 = vmatpush1.bf16.msra.mxu0 %v217
    %240 = vmatprep.subr.bf16.mxu0 0
    %241 = vmatpush1.bf16.msra.mxu0 %v216
    %242 = vmatprep.subr.bf16.mxu0 0
    %243 = vmatpush1.bf16.msra.mxu0 %v215
    %244 = vmatprep.subr.bf16.mxu0 0
    %245 = vmatpush1.bf16.msra.mxu0 %v214
    %246 = vmatprep.subr.bf16.mxu0 0
    %247 = vmatpush2.bf16.msra.mxu0 0
    %248 = vmatprep.subr.bf16.mxu0 0
    %249 = vmatpush2.bf16.msra.mxu0 0
    %250 = vmatprep.subr.bf16.mxu0 0
    %251 = vmatpush2.bf16.msra.mxu0 0
    %252 = vmatprep.subr.bf16.mxu0 0
    %253 = vmatpush2.bf16.msra.mxu0 0
    %254 = vmatprep.subr.bf16.mxu0 0
    %255 = vmatpush2.bf16.msra.mxu0 0
    %256 = vmatprep.subr.bf16.mxu0 0
    %257 = vmatpush2.bf16.msra.mxu0 0
    %258 = vmatprep.subr.bf16.mxu0 0
    %259 = vmatpush2.bf16.msra.mxu0 0
    %260 = vmatprep.subr.bf16.mxu0 0
    %261 = vmatpush2.bf16.msra.mxu0 0
    %262 = vmatprep.mubr.bf16.mxu0 0
    %263 = vmatmul.mubr.bf16.gmra.mxu0 %v172
    %v264 = vpop.f32.mrf.mxu0
    %v265 = vadd.f32 %v180, %v264
    %v266 = vpop.f32.mrf.mxu0
    %v267 = vpop.f32.mrf.mxu0
    %v268 = vadd.f32 %v180, %v267
    %v269 = vpop.f32.mrf.mxu0
    %270 = vmatprep.mubr.bf16.mxu0 0
    %271 = vmatmul.mubr.bf16.gmra.mxu0 %v173
    %v272 = vpop.f32.mrf.mxu0
    %v273 = vadd.f32 %v180, %v272
    %v274 = vpop.f32.mrf.mxu0
    %v275 = vpop.f32.mrf.mxu0
    %v276 = vadd.f32 %v180, %v275
    %v277 = vpop.f32.mrf.mxu0
    %278 = vmatprep.mubr.bf16.mxu0 0
    %279 = vmatmul.mubr.bf16.gmra.mxu0 %v174
    %v280 = vpop.f32.mrf.mxu0
    %v281 = vadd.f32 %v180, %v280
    %v282 = vpop.f32.mrf.mxu0
    %v283 = vpop.f32.mrf.mxu0
    %v284 = vadd.f32 %v180, %v283
    %v285 = vpop.f32.mrf.mxu0
    %286 = vmatprep.mubr.bf16.mxu0 0
    %287 = vmatmul.mubr.bf16.gmra.mxu0 %v175
    %v288 = vpop.f32.mrf.mxu0
    %v289 = vadd.f32 %v180, %v288
    %v290 = vpop.f32.mrf.mxu0
    %v291 = vpop.f32.mrf.mxu0
    %v292 = vadd.f32 %v180, %v291
    %v293 = vpop.f32.mrf.mxu0
    %294 = vdwg.mxu0
    %v295 = vtanh.pop %v265
    %v296 = vtanh.pop %v268
    %v297 = vtanh.pop %v273
    %v298 = vtanh.pop %v276
    %v299 = vtanh.pop %v281
    %v300 = vtanh.pop %v284
    %v301 = vtanh.pop %v289
    %v302 = vtanh.pop %v292
    %v303 = vld [vmem:[#allocation2] sm:$0xf]
    %v304 = vld [vmem:[#allocation2 + $0x4] sm:$0xf]
    %v305 = vld [vmem:[#allocation2 + $0x8] sm:$0xf]
    %v306 = vld [vmem:[#allocation2 + $0xc] sm:$0xf]
    %v307 = vld [vmem:[#allocation2 + $0x10] sm:$0xf]
    %v308 = vld [vmem:[#allocation2 + $0x14] sm:$0xf]
    %v309 = vld [vmem:[#allocation2 + $0x18] sm:$0xf]
    %v310 = vld [vmem:[#allocation2 + $0x1c] sm:$0xf]
    %v311 = vld [vmem:[#allocation2 + $0x20] sm:$0xf]
    %v312 = vld [vmem:[#allocation2 + $0x24] sm:$0xf]
    %v313 = vld [vmem:[#allocation2 + $0x28] sm:$0xf]
    %v314 = vld [vmem:[#allocation2 + $0x2c] sm:$0xf]
    %v315 = vld [vmem:[#allocation2 + $0x30] sm:$0xf]
    %v316 = vld [vmem:[#allocation2 + $0x34] sm:$0xf]
    %v317 = vld [vmem:[#allocation2 + $0x38] sm:$0xf]
    %v318 = vld [vmem:[#allocation2 + $0x3c] sm:$0xf]
    %v319 = vld [vmem:[%s6] sm:$0x1]
    %v320 = vpack.c.bf16 %v296, %v295
    %v321 = vpack.c.bf16 %v298, %v297
    %v322 = vpack.c.bf16 %v300, %v299
    %v323 = vpack.c.bf16 %v302, %v301
    %v325 = vlaneseq
    %v326 = vshrl.u32 %v325, 7
    %v327 = vsub.s32 0, %v326
    %v328 = vrot.slane %v319, %v327
    %v346 = vunpack.c.l.b16 %v303
    %v347 = vunpack.c.l.b16 %v304
    %v348 = vunpack.c.l.b16 %v305
    %v349 = vunpack.c.l.b16 %v306
    %v350 = vunpack.c.l.b16 %v307
    %v351 = vunpack.c.l.b16 %v308
    %v352 = vunpack.c.l.b16 %v309
    %v353 = vunpack.c.l.b16 %v310
    %v354 = vunpack.c.l.b16 %v311
    %v355 = vunpack.c.l.b16 %v312
    %v356 = vunpack.c.l.b16 %v313
    %v357 = vunpack.c.l.b16 %v314
    %v358 = vunpack.c.l.b16 %v315
    %v359 = vunpack.c.l.b16 %v316
    %v360 = vunpack.c.l.b16 %v317
    %v361 = vunpack.c.l.b16 %v318
    %v362 = vpack.c.b16 %v347, %v346
    %v363 = vpack.c.b16 %v349, %v348
    %v364 = vpack.c.b16 %v351, %v350
    %v365 = vpack.c.b16 %v353, %v352
    %v366 = vpack.c.b16 %v355, %v354
    %v367 = vpack.c.b16 %v357, %v356
    %v368 = vpack.c.b16 %v359, %v358
    %v369 = vpack.c.b16 %v361, %v360
    %378 = vmatprep.subr.bf16.mxu0 0
    %379 = vmatpush1.bf16.msra.mxu0 %v369
    %380 = vmatprep.subr.bf16.mxu0 0
    %381 = vmatpush1.bf16.msra.mxu0 %v368
    %382 = vmatprep.subr.bf16.mxu0 0
    %383 = vmatpush1.bf16.msra.mxu0 %v367
    %384 = vmatprep.subr.bf16.mxu0 0
    %385 = vmatpush1.bf16.msra.mxu0 %v366
    %386 = vmatprep.subr.bf16.mxu0 0
    %387 = vmatpush1.bf16.msra.mxu0 %v365
    %388 = vmatprep.subr.bf16.mxu0 0
    %389 = vmatpush1.bf16.msra.mxu0 %v364
    %390 = vmatprep.subr.bf16.mxu0 0
    %391 = vmatpush1.bf16.msra.mxu0 %v363
    %392 = vmatprep.subr.bf16.mxu0 0
    %393 = vmatpush1.bf16.msra.mxu0 %v362
    %394 = vmatprep.subr.bf16.mxu0 0
    %395 = vmatpush2.bf16.msra.mxu0 0
    %396 = vmatprep.subr.bf16.mxu0 0
    %397 = vmatpush2.bf16.msra.mxu0 0
    %398 = vmatprep.subr.bf16.mxu0 0
    %399 = vmatpush2.bf16.msra.mxu0 0
    %400 = vmatprep.subr.bf16.mxu0 0
    %401 = vmatpush2.bf16.msra.mxu0 0
    %402 = vmatprep.subr.bf16.mxu0 0
    %403 = vmatpush2.bf16.msra.mxu0 0
    %404 = vmatprep.subr.bf16.mxu0 0
    %405 = vmatpush2.bf16.msra.mxu0 0
    %406 = vmatprep.subr.bf16.mxu0 0
    %407 = vmatpush2.bf16.msra.mxu0 0
    %408 = vmatprep.subr.bf16.mxu0 0
    %409 = vmatpush2.bf16.msra.mxu0 0
    %410 = vmatprep.mubr.bf16.mxu0 0
    %411 = vmatmul.mubr.bf16.gmra.mxu0 %v320
    %v412 = vpop.f32.mrf.mxu0
    %v413 = vadd.f32 %v328, %v412
    %v414 = vpop.f32.mrf.mxu0
    %v415 = vpop.f32.mrf.mxu0
    %v416 = vadd.f32 %v328, %v415
    %v417 = vpop.f32.mrf.mxu0
    %418 = vmatprep.mubr.bf16.mxu0 0
    %419 = vmatmul.mubr.bf16.gmra.mxu0 %v321
    %v420 = vpop.f32.mrf.mxu0
    %v421 = vadd.f32 %v328, %v420
    %v422 = vpop.f32.mrf.mxu0
    %v423 = vpop.f32.mrf.mxu0
    %v424 = vadd.f32 %v328, %v423
    %v425 = vpop.f32.mrf.mxu0
    %426 = vmatprep.mubr.bf16.mxu0 0
    %427 = vmatmul.mubr.bf16.gmra.mxu0 %v322
    %v428 = vpop.f32.mrf.mxu0
    %v429 = vadd.f32 %v328, %v428
    %v430 = vpop.f32.mrf.mxu0
    %v431 = vpop.f32.mrf.mxu0
    %v432 = vadd.f32 %v328, %v431
    %v433 = vpop.f32.mrf.mxu0
    %434 = vmatprep.mubr.bf16.mxu0 0
    %435 = vmatmul.mubr.bf16.gmra.mxu0 %v323
    %v436 = vpop.f32.mrf.mxu0
    %v437 = vadd.f32 %v328, %v436
    %v438 = vpop.f32.mrf.mxu0
    %v439 = vpop.f32.mrf.mxu0
    %v440 = vadd.f32 %v328, %v439
    %v441 = vpop.f32.mrf.mxu0
    %442 = vdwg.mxu0
    %443 = vst [vmem:[#allocation5] sm:$0xff] %v413
    %444 = vst [vmem:[#allocation5 + $0x8] sm:$0xff] %v416
    %445 = vst [vmem:[#allocation5 + $0x10] sm:$0xff] %v421
    %446 = vst [vmem:[#allocation5 + $0x18] sm:$0xff] %v424
    %447 = vst [vmem:[#allocation5 + $0x20] sm:$0xff] %v429
    %448 = vst [vmem:[#allocation5 + $0x28] sm:$0xff] %v432
    %449 = vst [vmem:[#allocation5 + $0x30] sm:$0xff] %v437
    %450 = vst [vmem:[#allocation5 + $0x38] sm:$0xff] %v440
    // Predicated region
    $region34: #{tpu_custom_call.1} parent=1 // pred_check
      _
    $region35: #{tpu_custom_call.1} parent=1 // pred_check_branch
      %452 = sbr.rel (0) target = $region37
    $region36: #{tpu_custom_call.1} parent=1 // pred_region
      %s454 = ssub.s32 1024, 1024
      %455 = vsyncadd [#allocation4], %s454
      %s456 = sshll.u32 [#allocation5], 4
      %s457 = int_to_ptr.vmem [resolvable:$true] %s456
      %462 = dma.vmem_to_hbm [thread:$0]  %s457, 1024, %s7, [#allocation4], 128, 128, 8
    $region37: #{tpu_custom_call.1} parent=1 // pred_fallthru
      _
    // Predicated region
    $region38: #{tpu_custom_call.1} parent=1 // pred_check
      _
    $region39: #{tpu_custom_call.1} parent=1 // pred_check_branch
      %464 = sbr.rel (0) target = $region41
    $region40: #{tpu_custom_call.1} parent=1 // pred_region
      %465 = dma.done [#allocation4], 1024
    $region41: #{tpu_custom_call.1} parent=1 // pred_fallthru
      _
    %466 = vsyncpa [#allocation3], 1
    %467 = vsyncpa [#allocation4], 1

</llo_original>
